<compile_context>
chip_gen: v5e
topology: v5e:2x2
jax: 0.10.0
libtpu: 0.0.40
codegen_flags: <defaults>
</compile_context>

<pallas_src>
import functools

import jax
import jax.numpy as jnp
from jax import lax
from jax.experimental import pallas as pl
from jax.experimental.pallas import tpu as pltpu


def _round_up(x, m):
    return ((x + m - 1) // m) * m


def _pinyin_fused_kernel(ids_ref, ids_nxt_ref, g0_ref, g1_ref, b_ref, out_ref):
    """Fused embedding-gather + Conv1d(k=2) + global max-pool for one token tile.

    ids_ref     : (tn, P)   int32  pinyin ids for this tile of tokens
    ids_nxt_ref : (tn, P)   int32  ids shifted left by one position (last col masked)
    g0_ref      : (Vp, Cp)  f32/bf16  folded table for conv tap 0 (= table @ W0^T)
    g1_ref      : (Vp, Cp)  f32/bf16  folded table for conv tap 1 (= table @ W1^T)
    b_ref       : (1, Cp)   f32    padded Conv1d bias
    out_ref     : (tn, Cp)  f32
    """
    tn, P = ids_ref.shape
    Vp = g0_ref.shape[0]
    Cp = out_ref.shape[1]
    M = tn * P
    cdt = g0_ref.dtype

    # One-hot build: a lane-iota compare; the iota is shared between both taps.
    vocab_iota = lax.broadcasted_iota(jnp.int32, (tn, P, Vp), 2)
    oh0 = (vocab_iota == ids_ref[...][:, :, None]).astype(cdt).reshape(M, Vp)
    oh1 = (vocab_iota == ids_nxt_ref[...][:, :, None]).astype(cdt).reshape(M, Vp)

    # Folded gather+conv: each tap is a single (M, Vp) @ (Vp, Cp) MXU dot that
    # selects rows of the pre-multiplied table G_k (exact row selection, f32 acc).
    conv = (jnp.dot(oh0, g0_ref[...], preferred_element_type=jnp.float32)
            + jnp.dot(oh1, g1_ref[...], preferred_element_type=jnp.float32))
    conv = conv.reshape(tn, P, Cp)

    # Global max-pool over the conv time axis; the wrapped window at t = P-1
    # (pair [id_{P-1}, id_0]) is invalid -> mask to -inf before the max.
    # Mask uses a (tn, P, 1) iota broadcast along lanes (no (tn,P,Cp) int32 iota).
    t_idx = lax.broadcasted_iota(jnp.int32, (tn, P, 1), 1)
    pooled = jnp.max(jnp.where(t_idx < P - 1, conv, -jnp.inf), axis=1)   # (tn, Cp)

    # Bias is constant over time -> adding it after the max is exact & cheaper.
    out_ref[...] = (pooled + b_ref[...]).astype(out_ref.dtype)


@functools.partial(jax.jit, static_argnames=("tile_n", "use_bf16"))
def pinyin_embedding_forward(pinyin_ids, emb_table, conv_w, conv_b, *,
                             tile_n=512, use_bf16=False):
    """pinyin_ids: (bs, sl, P) int32; emb_table: (V, E) f32;
    conv_w: (C, E, 2) f32 (PyTorch Conv1d layout); conv_b: (C,) f32.
    Returns (bs, sl, C) f32.  use_bf16=True runs the MXU dots in bf16
    (recommended on v6e/v7x; table/weights are bf16-rounded, ~1e-3 relative)."""
    bs, sl, P = pinyin_ids.shape
    V, E = emb_table.shape
    C = conv_w.shape[0]
    if P < 2:
        raise ValueError(
            f"Conv1d(kernel_size=2) needs pinyin_locs >= 2, got {P}")
    N = bs * sl

    # Lane-dense padding (multiples of 128) for vocab and channel dims.
    Vp = _round_up(V, 128)
    Cp = _round_up(C, 128)

    # Tile selection: biggest useful tile (sweep 512-2048 for large N), multiple
    # of 8 sublanes, and >= 2 grid steps whenever N allows it so the "parallel"
    # grid axis feeds both v7x TensorCores.
    tile_n = max(8, min(tile_n, _round_up(pl.cdiv(N, 2), 8)))
    tile_n = _round_up(tile_n, 8)
    N_pad = _round_up(N, tile_n)

    ids = pinyin_ids.reshape(N, P).astype(jnp.int32)
    ids = jnp.pad(ids, ((0, N_pad - N), (0, 0)))            # pad tokens with id 0
    # "next" pinyin position for each conv window; last column is masked in-kernel.
    ids_nxt = jnp.roll(ids, shift=-1, axis=1)

    # Fold the embedding table into each conv tap host-side: G_k = table @ W_k^T.
    # The in-kernel one-hot gather is an exact row selection, so this is a pure
    # reassociation of the same f32 contraction.
    compute_dtype = jnp.bfloat16 if use_bf16 else jnp.float32
    tbl = emb_table.astype(jnp.float32)                      # (V, E)
    g0 = tbl @ conv_w[:, :, 0].astype(jnp.float32).T         # (V, C)
    g1 = tbl @ conv_w[:, :, 1].astype(jnp.float32).T         # (V, C)
    g0 = jnp.pad(g0, ((0, Vp - V), (0, Cp - C))).astype(compute_dtype)
    g1 = jnp.pad(g1, ((0, Vp - V), (0, Cp - C))).astype(compute_dtype)
    b_packed = jnp.pad(conv_b.astype(jnp.float32), (0, Cp - C)).reshape(1, Cp)

    grid = (N_pad // tile_n,)
    M_total = N_pad * P
    itemsize = jnp.dtype(compute_dtype).itemsize
    cost = pl.CostEstimate(
        flops=2 * 2 * M_total * Vp * Cp,                     # two (M,Vp)@(Vp,Cp) dots
        transcendentals=0,
        bytes_accessed=(2 * M_total * 4 + 2 * Vp * Cp * itemsize
                        + Cp * 4 + N_pad * Cp * 4),
    )
    # Per-step intermediates scale ~linearly with tile_n (~16-24 KiB/token after
    # the fold); keep the default request well under v7x's 64 MiB physical VMEM,
    # allow bigger budgets for large-tile sweeps on v5e/v6e (128 MiB).
    vmem_limit = int(min(100 * 1024 * 1024, 24 * 1024 * 1024 + 24 * 1024 * tile_n))

    out = pl.pallas_call(
        _pinyin_fused_kernel,
        out_shape=jax.ShapeDtypeStruct((N_pad, Cp), jnp.float32),
        grid_spec=pltpu.PrefetchScalarGridSpec(
            num_scalar_prefetch=0,
            grid=grid,
            in_specs=[
                pl.BlockSpec((tile_n, P), lambda i: (i, 0)),     # ids tile
                pl.BlockSpec((tile_n, P), lambda i: (i, 0)),     # shifted ids tile
                pl.BlockSpec((Vp, Cp), lambda i: (0, 0)),        # folded tap-0 table (resident)
                pl.BlockSpec((Vp, Cp), lambda i: (0, 0)),        # folded tap-1 table (resident)
                pl.BlockSpec((1, Cp), lambda i: (0, 0)),         # conv bias
            ],
            out_specs=pl.BlockSpec((tile_n, Cp), lambda i: (i, 0)),
        ),
        compiler_params=pltpu.CompilerParams(
            dimension_semantics=("parallel",),
            vmem_limit_bytes=vmem_limit,
        ),
        cost_estimate=cost,
    )(ids, ids_nxt, g0, g1, b_packed)

    return out[:N, :C].reshape(bs, sl, C)


class PinyinEmbeddingPallas:
    """JAX/Pallas port of ChineseBERT's PinyinEmbedding (forward only)."""

    # TODO(synk): the original module downloads/parses pinyin_map.json to size the
    # vocab; here the vocab size is a constructor argument and params are built in-script.
    def __init__(self, vocab_size: int, embedding_size: int, pinyin_out_dim: int, key):
        k_emb, k_w, k_b = jax.random.split(key, 3)
        self.embedding_size = embedding_size
        self.pinyin_out_dim = pinyin_out_dim
        # nn.Embedding default init: N(0, 1)
        self.emb_table = jax.random.normal(
            k_emb, (vocab_size, embedding_size), dtype=jnp.float32)
        # nn.Conv1d(E, C, kernel_size=2): U(-1/sqrt(fan_in), 1/sqrt(fan_in))
        fan_in = embedding_size * 2
        bound = 1.0 / (fan_in ** 0.5)
        self.conv_w = jax.random.uniform(
            k_w, (pinyin_out_dim, embedding_size, 2),
            minval=-bound, maxval=bound, dtype=jnp.float32)
        self.conv_b = jax.random.uniform(
            k_b, (pinyin_out_dim,), minval=-bound, maxval=bound, dtype=jnp.float32)

    def __call__(self, pinyin_ids, *, tile_n=512, use_bf16=False):
        return pinyin_embedding_forward(pinyin_ids, self.emb_table,
                                        self.conv_w, self.conv_b,
                                        tile_n=tile_n, use_bf16=use_bf16)


def _reference_forward(mod: PinyinEmbeddingPallas, pinyin_ids):
    """Pure-JAX reference matching the PyTorch forward exactly."""
    bs, sl, P = pinyin_ids.shape
    embed = mod.emb_table[pinyin_ids]                          # (bs, sl, P, E)
    x = jnp.transpose(embed.reshape(bs * sl, P, mod.embedding_size), (0, 2, 1))
    w = mod.conv_w                                             # (C, E, 2)
    conv = (jnp.einsum("nep,ce->ncp", x[:, :, :-1], w[:, :, 0])
            + jnp.einsum("nep,ce->ncp", x[:, :, 1:], w[:, :, 1])
            + mod.conv_b[None, :, None])                       # (N, C, P-1)
    pooled = jnp.max(conv, axis=-1)                            # (N, C)
    return pooled.reshape(bs, sl, mod.pinyin_out_dim)


if __name__ == "__main__":
    # Small shapes consistent with the module (ChineseBERT uses E=128, P=8,
    # vocab ~ 30 pinyin chars); C=96 / V=30 deliberately exercise the padding path.
    bs, sentence_length, pinyin_locs = 2, 8, 8
    vocab_size, embedding_size, pinyin_out_dim = 30, 128, 96

    root = jax.random.PRNGKey(0)
    k_param, k_data = jax.random.split(root)

    mod = PinyinEmbeddingPallas(vocab_size, embedding_size, pinyin_out_dim, key=k_param)
    pinyin_ids = jax.random.randint(
        k_data, (bs, sentence_length, pinyin_locs), 0, vocab_size, dtype=jnp.int32)

    ref = _reference_forward(mod, pinyin_ids)

    # Exact f32 path.
    out = jax.block_until_ready(mod(pinyin_ids))
    assert out.shape == (bs, sentence_length, pinyin_out_dim)
    err = jnp.max(jnp.abs(out - ref))
    assert jnp.allclose(out, ref, atol=1e-4, rtol=1e-4), f"f32 max abs err = {err}"

    # bf16 MXU path (recommended on v6e/v7x); only table/weights are bf16-rounded.
    out_bf16 = jax.block_until_ready(mod(pinyin_ids, use_bf16=True))
    err_bf16 = jnp.max(jnp.abs(out_bf16 - ref))
    assert jnp.allclose(out_bf16, ref, atol=3e-2, rtol=3e-2), \
        f"bf16 max abs err = {err_bf16}"

    print("KERNEL_OK")
</pallas_src>

<mosaic_0001>
module attributes {stable_mosaic.version = 11 : i64} {
  func.func @_pinyin_fused_kernel(%arg0: i32, %arg1: memref<8x8xi32, #tpu.memory_space<vmem>>, %arg2: memref<8x8xi32, #tpu.memory_space<vmem>>, %arg3: memref<128x128xf32, #tpu.memory_space<vmem>>, %arg4: memref<128x128xf32, #tpu.memory_space<vmem>>, %arg5: memref<1x128xf32, #tpu.memory_space<vmem>>, %arg6: memref<8x128xf32, #tpu.memory_space<vmem>>) attributes {dimension_semantics = [#tpu.dimension_semantics<parallel>], iteration_bounds = array<i64: 2>, scalar_prefetch = 0 : i64, scratch_operands = 0 : i64, tpu.core_type = #tpu.core_type<tc>, window_params = [{transform_indices = @transform_0, window_bounds = array<i64: 8, 8>}, {transform_indices = @transform_1, window_bounds = array<i64: 8, 8>}, {pipeline_mode = #tpu.pipeline_mode<synchronous>, transform_indices = @transform_2, window_bounds = array<i64: 128, 128>}, {pipeline_mode = #tpu.pipeline_mode<synchronous>, transform_indices = @transform_3, window_bounds = array<i64: 128, 128>}, {pipeline_mode = #tpu.pipeline_mode<synchronous>, transform_indices = @transform_4, window_bounds = array<i64: 1, 128>}, {transform_indices = @transform_5, window_bounds = array<i64: 8, 128>}]} {
    %0 = tpu.iota {dimensions = array<i32: 2>} : vector<8x8x128xi32>
    %c0 = arith.constant 0 : index
    %c0_0 = arith.constant 0 : index
    %1 = vector.load %arg1[%c0, %c0_0] : memref<8x8xi32, #tpu.memory_space<vmem>>, vector<8x8xi32>
    %2 = vector.shape_cast %1 : vector<8x8xi32> to vector<8x8x1xi32>
    %3 = vector.broadcast %2 : vector<8x8x1xi32> to vector<8x8x128xi32>
    %4 = arith.cmpi eq, %0, %3 : vector<8x8x128xi32>
    %5 = arith.extui %4 : vector<8x8x128xi1> to vector<8x8x128xi32>
    %6 = arith.sitofp %5 : vector<8x8x128xi32> to vector<8x8x128xf32>
    %7 = vector.shape_cast %6 : vector<8x8x128xf32> to vector<64x128xf32>
    %c0_1 = arith.constant 0 : index
    %c0_2 = arith.constant 0 : index
    %8 = vector.load %arg2[%c0_1, %c0_2] : memref<8x8xi32, #tpu.memory_space<vmem>>, vector<8x8xi32>
    %9 = vector.shape_cast %8 : vector<8x8xi32> to vector<8x8x1xi32>
    %10 = vector.broadcast %9 : vector<8x8x1xi32> to vector<8x8x128xi32>
    %11 = arith.cmpi eq, %0, %10 : vector<8x8x128xi32>
    %12 = arith.extui %11 : vector<8x8x128xi1> to vector<8x8x128xi32>
    %13 = arith.sitofp %12 : vector<8x8x128xi32> to vector<8x8x128xf32>
    %14 = vector.shape_cast %13 : vector<8x8x128xf32> to vector<64x128xf32>
    %c0_3 = arith.constant 0 : index
    %c0_4 = arith.constant 0 : index
    %15 = vector.load %arg3[%c0_3, %c0_4] : memref<128x128xf32, #tpu.memory_space<vmem>>, vector<128x128xf32>
    %cst = arith.constant dense<0.000000e+00> : vector<64x128xf32>
    %16 = tpu.matmul %7, %15, %cst {dimension_numbers = #tpu.dot_dimension_numbers<[1], [0], [0], [1], [0, 0, 1, 1], [], []>} : vector<64x128xf32>, vector<128x128xf32>, vector<64x128xf32> -> vector<64x128xf32>
    %c0_5 = arith.constant 0 : index
    %c0_6 = arith.constant 0 : index
    %17 = vector.load %arg4[%c0_5, %c0_6] : memref<128x128xf32, #tpu.memory_space<vmem>>, vector<128x128xf32>
    %cst_7 = arith.constant dense<0.000000e+00> : vector<64x128xf32>
    %18 = tpu.matmul %14, %17, %cst_7 {dimension_numbers = #tpu.dot_dimension_numbers<[1], [0], [0], [1], [0, 0, 1, 1], [], []>} : vector<64x128xf32>, vector<128x128xf32>, vector<64x128xf32> -> vector<64x128xf32>
    %19 = arith.addf %16, %18 : vector<64x128xf32>
    %20 = vector.shape_cast %19 : vector<64x128xf32> to vector<8x8x128xf32>
    %21 = tpu.iota {dimensions = array<i32: 1>} : vector<8x8x1xi32>
    %c7_i32 = arith.constant 7 : i32
    %22 = vector.broadcast %c7_i32 : i32 to vector<8x8x1xi32>
    %23 = arith.cmpi slt, %21, %22 : vector<8x8x1xi32>
    %cst_8 = arith.constant 0xFF800000 : f32
    %24 = vector.shape_cast %23 : vector<8x8x1xi1> to vector<8x8x1xi1>
    %25 = vector.broadcast %24 : vector<8x8x1xi1> to vector<8x8x128xi1>
    %26 = vector.broadcast %cst_8 : f32 to vector<8x8x128xf32>
    %27 = arith.select %25, %20, %26 : vector<8x8x128xi1>, vector<8x8x128xf32>
    %cst_9 = arith.constant dense<0xFF800000> : vector<8x128xf32>
    %28 = vector.multi_reduction <maximumf>, %27, %cst_9 [1] : vector<8x8x128xf32> to vector<8x128xf32>
    %c0_10 = arith.constant 0 : index
    %c0_11 = arith.constant 0 : index
    %29 = vector.load %arg5[%c0_10, %c0_11] : memref<1x128xf32, #tpu.memory_space<vmem>>, vector<1x128xf32>
    %30 = vector.broadcast %29 : vector<1x128xf32> to vector<8x128xf32>
    %31 = arith.addf %28, %30 : vector<8x128xf32>
    %c0_12 = arith.constant 0 : index
    %c0_13 = arith.constant 0 : index
    %32 = vector.load %arg6[%c0_12, %c0_13] : memref<8x128xf32, #tpu.memory_space<vmem>>, vector<8x128xf32>
    tpu.vector_store %arg6[%c0_12, %c0_13], %31 {strides = array<i32>} : memref<8x128xf32, #tpu.memory_space<vmem>>, vector<8x128xf32>,
    return
  }
  func.func @transform_0(%arg0: i32) -> (i32, i32) {
    %c0_i32 = arith.constant 0 : i32
    %c0_i32_0 = arith.constant 0 : i32
    return %arg0, %c0_i32 : i32, i32
  }
  func.func @transform_1(%arg0: i32) -> (i32, i32) {
    %c0_i32 = arith.constant 0 : i32
    %c0_i32_0 = arith.constant 0 : i32
    return %arg0, %c0_i32 : i32, i32
  }
  func.func @transform_2(%arg0: i32) -> (i32, i32) {
    %c0_i32 = arith.constant 0 : i32
    %c0_i32_0 = arith.constant 0 : i32
    %c0_i32_1 = arith.constant 0 : i32
    return %c0_i32, %c0_i32_0 : i32, i32
  }
  func.func @transform_3(%arg0: i32) -> (i32, i32) {
    %c0_i32 = arith.constant 0 : i32
    %c0_i32_0 = arith.constant 0 : i32
    %c0_i32_1 = arith.constant 0 : i32
    return %c0_i32, %c0_i32_0 : i32, i32
  }
  func.func @transform_4(%arg0: i32) -> (i32, i32) {
    %c0_i32 = arith.constant 0 : i32
    %c0_i32_0 = arith.constant 0 : i32
    %c0_i32_1 = arith.constant 0 : i32
    return %c0_i32, %c0_i32_0 : i32, i32
  }
  func.func @transform_5(%arg0: i32) -> (i32, i32) {
    %c0_i32 = arith.constant 0 : i32
    %c0_i32_0 = arith.constant 0 : i32
    return %arg0, %c0_i32 : i32, i32
  }
}

</mosaic_0001>

<llo_original>
// kernel: pinyin_embedding_forward.1
$region0: #{pinyin_embedding_forward.1}
  #allocation0 [shape = 'u32[]', space=smem, size = 0x4, offset = 0x4, fixed_abs, tag = 'smem constant byte address 0x4 - core index']
  #allocation1 [shape = 'u32[72,128]{1,0:T(1,128)}', space=vmem, size = 0x9000, scoped, tag = 'internal scratch']
  %s0 = inlined_call_operand.vmem [shape: s32[16,8], index: 0, kind: input, shape index: {}]
  %s1 = inlined_call_operand.vmem [shape: s32[16,8], index: 1, kind: input, shape index: {}]
  %s2 = inlined_call_operand.vmem [shape: f32[128,128], index: 2, kind: input, shape index: {}]
  %s3 = inlined_call_operand.vmem [shape: f32[128,128], index: 3, kind: input, shape index: {}]
  %s4 = inlined_call_operand.vmem [shape: f32[1,128], index: 4, kind: input, shape index: {}]
  %s5 = inlined_call_operand.vmem [shape: f32[16,128], index: 5, kind: output, shape index: {}]
  %s6 = sld [smem:[#allocation0]]
  $region53: #{pinyin_embedding_forward.1} parent=0
    _
  %s8 = ssub.s32 1, %s6
  %s9 = scalar_select 0, %s8, %s6
  loop: start=0, step=1, limit=4
  $region2: #{pinyin_embedding_forward.1} parent=0 // loop_pre_header
    _
  $region3: #{pinyin_embedding_forward.1} parent=0 // loop_header
    %s11 = sphi 0, %s15
    %p12 = scmp.ge.s32.totalorder %s11, 4
    %s21 = sphi 0, %s23
    %s24 = sphi 0, %s21
    %s25 = sphi 0, %s24
    %s41 = sphi 0, %s25
    %s47 = sphi 0, %s49
    %s50 = sphi 0, %s47
    %s51 = sphi 0, %s50
    %s67 = sphi 0, %s51
    %s71 = sphi 0, %s71
    %s73 = sphi 0, %s71
    %s74 = sphi 0, %s73
    %s88 = sphi 0, %s74
    %s92 = sphi 0, %s92
    %s94 = sphi 0, %s92
    %s95 = sphi 0, %s94
    %s109 = sphi 0, %s95
    %s113 = sphi 0, %s113
    %s115 = sphi 0, %s113
    %s116 = sphi 0, %s115
    %s130 = sphi 0, %s116
    %s136 = sphi 0, %s138
    %s139 = sphi 0, %s136
    %s140 = sphi 0, %s139
    %s156 = sphi 0, %s140
  $region4: #{pinyin_embedding_forward.1} parent=0 // loop_header_branch
    %14 = sbr.rel (%p12) target = $region8
  $region5: #{pinyin_embedding_forward.1} parent=0 // loop_body
    %s16 = ssub.s32 %s11, 1
    %s17 = ssub.s32 %s11, 2
    %s18 = sadd.s32 %s11, 1
    %s19 = ssub.s32 %s11, %s18
    %p20 = scmp.eq.s32.totalorder %s19, 0
    %s22 = sadd.s32 %s21, 1
    %s23 = scalar_select %p20, %s21, %s22
    %p26 = pneg %p20
    %p27 = scmp.eq.s32.totalorder %s11, 1
    %p28 = por %p26, %p27
    %p29 = scmp.ne.s32.totalorder %s21, %s24
    %p30 = scmp.eq.s32.totalorder %s11, 0
    %p31 = por %p29, %p30
    %p32 = scmp.ne.s32.totalorder %s21, %s24
    %p33 = scmp.eq.s32.totalorder %s16, 1
    %p34 = por %p32, %p33
    %p35 = scmp.ne.s32.totalorder %s24, %s25
    %p36 = scmp.eq.s32.totalorder %s16, 0
    %p37 = por %p35, %p36
    %p38 = scmp.ne.s32.totalorder %s24, %s25
    %p39 = scmp.eq.s32.totalorder %s17, 1
    %p40 = por %p38, %p39
    %p42 = scmp.ne.s32.totalorder %s25, %s41
    %p43 = scmp.eq.s32.totalorder %s17, 0
    %p44 = por %p42, %p43
    %s45 = ssub.s32 %s11, %s18
    %p46 = scmp.eq.s32.totalorder %s45, 0
    %s48 = sadd.s32 %s47, 1
    %s49 = scalar_select %p46, %s47, %s48
    %p52 = pneg %p46
    %p53 = scmp.eq.s32.totalorder %s11, 1
    %p54 = por %p52, %p53
    %p55 = scmp.ne.s32.totalorder %s47, %s50
    %p56 = scmp.eq.s32.totalorder %s11, 0
    %p57 = por %p55, %p56
    %p58 = scmp.ne.s32.totalorder %s47, %s50
    %p59 = scmp.eq.s32.totalorder %s16, 1
    %p60 = por %p58, %p59
    %p61 = scmp.ne.s32.totalorder %s50, %s51
    %p62 = scmp.eq.s32.totalorder %s16, 0
    %p63 = por %p61, %p62
    %p64 = scmp.ne.s32.totalorder %s50, %s51
    %p65 = scmp.eq.s32.totalorder %s17, 1
    %p66 = por %p64, %p65
    %p68 = scmp.ne.s32.totalorder %s51, %s67
    %p69 = scmp.eq.s32.totalorder %s17, 0
    %p70 = por %p68, %p69
    %s72 = sadd.s32 %s71, 1
    %p75 = scmp.eq.s32.totalorder %s11, 1
    %p76 = scmp.ne.s32.totalorder %s71, %s73
    %p77 = scmp.eq.s32.totalorder %s11, 0
    %p78 = por %p76, %p77
    %p79 = scmp.ne.s32.totalorder %s71, %s73
    %p80 = scmp.eq.s32.totalorder %s16, 1
    %p81 = por %p79, %p80
    %p82 = scmp.ne.s32.totalorder %s73, %s74
    %p83 = scmp.eq.s32.totalorder %s16, 0
    %p84 = por %p82, %p83
    %p85 = scmp.ne.s32.totalorder %s73, %s74
    %p86 = scmp.eq.s32.totalorder %s17, 1
    %p87 = por %p85, %p86
    %p89 = scmp.ne.s32.totalorder %s74, %s88
    %p90 = scmp.eq.s32.totalorder %s17, 0
    %p91 = por %p89, %p90
    %s93 = sadd.s32 %s92, 1
    %p96 = scmp.eq.s32.totalorder %s11, 1
    %p97 = scmp.ne.s32.totalorder %s92, %s94
    %p98 = scmp.eq.s32.totalorder %s11, 0
    %p99 = por %p97, %p98
    %p100 = scmp.ne.s32.totalorder %s92, %s94
    %p101 = scmp.eq.s32.totalorder %s16, 1
    %p102 = por %p100, %p101
    %p103 = scmp.ne.s32.totalorder %s94, %s95
    %p104 = scmp.eq.s32.totalorder %s16, 0
    %p105 = por %p103, %p104
    %p106 = scmp.ne.s32.totalorder %s94, %s95
    %p107 = scmp.eq.s32.totalorder %s17, 1
    %p108 = por %p106, %p107
    %p110 = scmp.ne.s32.totalorder %s95, %s109
    %p111 = scmp.eq.s32.totalorder %s17, 0
    %p112 = por %p110, %p111
    %s114 = sadd.s32 %s113, 1
    %p117 = scmp.eq.s32.totalorder %s11, 1
    %p118 = scmp.ne.s32.totalorder %s113, %s115
    %p119 = scmp.eq.s32.totalorder %s11, 0
    %p120 = por %p118, %p119
    %p121 = scmp.ne.s32.totalorder %s113, %s115
    %p122 = scmp.eq.s32.totalorder %s16, 1
    %p123 = por %p121, %p122
    %p124 = scmp.ne.s32.totalorder %s115, %s116
    %p125 = scmp.eq.s32.totalorder %s16, 0
    %p126 = por %p124, %p125
    %p127 = scmp.ne.s32.totalorder %s115, %s116
    %p128 = scmp.eq.s32.totalorder %s17, 1
    %p129 = por %p127, %p128
    %p131 = scmp.ne.s32.totalorder %s116, %s130
    %p132 = scmp.eq.s32.totalorder %s17, 0
    %p133 = por %p131, %p132
    %s134 = ssub.s32 %s11, %s18
    %p135 = scmp.eq.s32.totalorder %s134, 0
    %s137 = sadd.s32 %s136, 1
    %s138 = scalar_select %p135, %s136, %s137
    %p141 = pneg %p135
    %p142 = scmp.eq.s32.totalorder %s11, 1
    %p143 = por %p141, %p142
    %p144 = scmp.ne.s32.totalorder %s136, %s139
    %p145 = scmp.eq.s32.totalorder %s11, 0
    %p146 = por %p144, %p145
    %p147 = scmp.ne.s32.totalorder %s136, %s139
    %p148 = scmp.eq.s32.totalorder %s16, 1
    %p149 = por %p147, %p148
    %p150 = scmp.ne.s32.totalorder %s139, %s140
    %p151 = scmp.eq.s32.totalorder %s16, 0
    %p152 = por %p150, %p151
    %p153 = scmp.ne.s32.totalorder %s139, %s140
    %p154 = scmp.eq.s32.totalorder %s17, 1
    %p155 = por %p153, %p154
    %p157 = scmp.ne.s32.totalorder %s140, %s156
    %p158 = scmp.eq.s32.totalorder %s17, 0
    %p159 = por %p157, %p158
    %p160 = scmp.le.s32.totalorder 1, %s11
    %p161 = scmp.lt.s32.totalorder %s11, 3
    %p162 = pnand %p160, %p161
    %p163 = pneg %p162
    // Predicated region
    $region9: #{pinyin_embedding_forward.1} parent=5 // pred_check
      _
    $region10: #{pinyin_embedding_forward.1} parent=5 // pred_check_branch
      %165 = sbr.rel (%p162) target = $region12
    $region11: #{pinyin_embedding_forward.1} parent=5 // pred_region
      %s166 = ssub.s32 %s11, 1
      // Predicated region
      $region13: #{pinyin_embedding_forward.1} parent=11 // pred_check
        %p167 = pneg %p84
      $region14: #{pinyin_embedding_forward.1} parent=11 // pred_check_branch
        %169 = sbr.rel (%p167) target = $region16
      $region15: #{pinyin_embedding_forward.1} parent=11 // pred_region
        _
      $region16: #{pinyin_embedding_forward.1} parent=11 // pred_fallthru
        _
      // Predicated region
      $region17: #{pinyin_embedding_forward.1} parent=11 // pred_check
        %p170 = pneg %p105
      $region18: #{pinyin_embedding_forward.1} parent=11 // pred_check_branch
        %172 = sbr.rel (%p170) target = $region20
      $region19: #{pinyin_embedding_forward.1} parent=11 // pred_region
        _
      $region20: #{pinyin_embedding_forward.1} parent=11 // pred_fallthru
        _
      // Predicated region
      $region21: #{pinyin_embedding_forward.1} parent=11 // pred_check
        %p173 = pneg %p126
      $region22: #{pinyin_embedding_forward.1} parent=11 // pred_check_branch
        %175 = sbr.rel (%p173) target = $region24
      $region23: #{pinyin_embedding_forward.1} parent=11 // pred_region
        _
      $region24: #{pinyin_embedding_forward.1} parent=11 // pred_fallthru
        _
    $region12: #{pinyin_embedding_forward.1} parent=5 // pred_fallthru
      _
    %p176 = scmp.lt.s32.totalorder %s11, 2
    // Predicated region
    $region25: #{pinyin_embedding_forward.1} parent=5 // pred_check
      %p177 = pneg %p176
    $region26: #{pinyin_embedding_forward.1} parent=5 // pred_check_branch
      %179 = sbr.rel (%p177) target = $region28
    $region27: #{pinyin_embedding_forward.1} parent=5 // pred_region
      // Predicated region
      $region29: #{pinyin_embedding_forward.1} parent=27 // pred_check
        %p180 = pneg %p31
      $region30: #{pinyin_embedding_forward.1} parent=27 // pred_check_branch
        %182 = sbr.rel (%p180) target = $region32
      $region31: #{pinyin_embedding_forward.1} parent=27 // pred_region
        %p183 = scmp.lt.s32.totalorder %s11, 1
        %s184 = scalar_select %p183, %s11, 1
        %s185 = smul.addr %s184, 8
        %s186 = scalar_lea.vmem %s0, %s185
      $region32: #{pinyin_embedding_forward.1} parent=27 // pred_fallthru
        _
      // Predicated region
      $region33: #{pinyin_embedding_forward.1} parent=27 // pred_check
        %p187 = pneg %p57
      $region34: #{pinyin_embedding_forward.1} parent=27 // pred_check_branch
        %189 = sbr.rel (%p187) target = $region36
      $region35: #{pinyin_embedding_forward.1} parent=27 // pred_region
        %p190 = scmp.lt.s32.totalorder %s11, 1
        %s191 = scalar_select %p190, %s11, 1
        %s192 = smul.addr %s191, 8
        %s193 = scalar_lea.vmem %s1, %s192
      $region36: #{pinyin_embedding_forward.1} parent=27 // pred_fallthru
        _
    $region28: #{pinyin_embedding_forward.1} parent=5 // pred_fallthru
      _
    %p194 = scmp.le.s32.totalorder 1, %s11
    %p195 = scmp.lt.s32.totalorder %s11, 3
    %p196 = pnand %p194, %p195
    %p197 = pneg %p196
    // Predicated region
    $region37: #{pinyin_embedding_forward.1} parent=5 // pred_check
      _
    $region38: #{pinyin_embedding_forward.1} parent=5 // pred_check_branch
      %199 = sbr.rel (%p196) target = $region40
    $region39: #{pinyin_embedding_forward.1} parent=5 // pred_region
      %s200 = ssub.s32 %s11, 1
      %p201 = scmp.lt.s32.totalorder %s16, 1
      %s202 = scalar_select %p201, %s16, 1
      %s203 = smul.addr %s202, 8
      %s204 = scalar_lea.vmem %s0, %s203
      %p205 = pneg %p37
      %p206 = pneg %p34
      %p207 = scmp.lt.s32.totalorder %s16, 1
      %s208 = scalar_select %p207, %s16, 1
      %s209 = smul.addr %s208, 8
      %s210 = scalar_lea.vmem %s1, %s209
      %p211 = pneg %p63
      %p212 = pneg %p60
      %p213 = pneg %p84
      %p214 = pneg %p81
      %p215 = pneg %p105
      %p216 = pneg %p102
      %p217 = pneg %p126
      %p218 = pneg %p123
      %p219 = pneg %p152
      %p220 = pneg %p149
      %p221 = scmp.lt.s32.totalorder %s16, 1
      %s222 = scalar_select %p221, %s16, 1
      %s223 = smul.addr %s222, 8
      %s224 = scalar_lea.vmem %s5, %s223
      %p225 = scmp.lt.s32.totalorder %s16, 1
      %s226 = scalar_select %p225, %s16, 1
      %s227 = smul.addr %s226, 8
      %s228 = scalar_lea.vmem %s0, %s227
      %p229 = scmp.lt.s32.totalorder %s16, 1
      %s230 = scalar_select %p229, %s16, 1
      %s231 = smul.addr %s230, 8
      %s232 = scalar_lea.vmem %s1, %s231
      %p233 = scmp.lt.s32.totalorder %s16, 1
      %s234 = scalar_select %p233, %s16, 1
      %s235 = smul.addr %s234, 8
      %s236 = scalar_lea.vmem %s5, %s235
      %v237 = vlaneseq
      %v238 = vand.u32 %v237, 127
      %v239 = vld [vmem:[%s228] sm:$0xff]
      %v240 = vperm.slane %v239, 0
      %v241 = vlaneseq
      %v242 = vshrl.u32 %v241, 7
      %244 = vset.pattern.permute.xlu0 %v242
      %245 = vperm.xlu0 %244, %v240
      %v246 = vpop.permute.xlu0 %245
      %v247 = vperm.slane %v239, 1
      %v248 = vlaneseq
      %v249 = vshrl.u32 %v248, 7
      %251 = vset.pattern.permute.xlu0 %v249
      %252 = vperm.xlu0 %251, %v247
      %v253 = vpop.permute.xlu0 %252
      %v254 = vperm.slane %v239, 2
      %v255 = vlaneseq
      %v256 = vshrl.u32 %v255, 7
      %258 = vset.pattern.permute.xlu0 %v256
      %259 = vperm.xlu0 %258, %v254
      %v260 = vpop.permute.xlu0 %259
      %v261 = vperm.slane %v239, 3
      %v262 = vlaneseq
      %v263 = vshrl.u32 %v262, 7
      %265 = vset.pattern.permute.xlu0 %v263
      %266 = vperm.xlu0 %265, %v261
      %v267 = vpop.permute.xlu0 %266
      %v268 = vperm.slane %v239, 4
      %v269 = vlaneseq
      %v270 = vshrl.u32 %v269, 7
      %272 = vset.pattern.permute.xlu0 %v270
      %273 = vperm.xlu0 %272, %v268
      %v274 = vpop.permute.xlu0 %273
      %v275 = vperm.slane %v239, 5
      %v276 = vlaneseq
      %v277 = vshrl.u32 %v276, 7
      %279 = vset.pattern.permute.xlu0 %v277
      %280 = vperm.xlu0 %279, %v275
      %v281 = vpop.permute.xlu0 %280
      %v282 = vperm.slane %v239, 6
      %v283 = vlaneseq
      %v284 = vshrl.u32 %v283, 7
      %286 = vset.pattern.permute.xlu0 %v284
      %287 = vperm.xlu0 %286, %v282
      %v288 = vpop.permute.xlu0 %287
      %v289 = vperm.slane %v239, 7
      %v290 = vlaneseq
      %v291 = vshrl.u32 %v290, 7
      %293 = vset.pattern.permute.xlu0 %v291
      %294 = vperm.xlu0 %293, %v289
      %v295 = vpop.permute.xlu0 %294
      %vm296 = vcmp.eq.s32.totalorder %v238, %v246
      %vm297 = vcmp.eq.s32.totalorder %v238, %v253
      %vm298 = vcmp.eq.s32.totalorder %v238, %v260
      %vm299 = vcmp.eq.s32.totalorder %v238, %v267
      %vm300 = vcmp.eq.s32.totalorder %v238, %v274
      %vm301 = vcmp.eq.s32.totalorder %v238, %v281
      %vm302 = vcmp.eq.s32.totalorder %v238, %v288
      %vm303 = vcmp.eq.s32.totalorder %v238, %v295
      %v304 = vsel %vm296, 1, 0
      %v305 = vsel %vm297, 1, 0
      %v306 = vsel %vm298, 1, 0
      %v307 = vsel %vm299, 1, 0
      %v308 = vsel %vm300, 1, 0
      %v309 = vsel %vm301, 1, 0
      %v310 = vsel %vm302, 1, 0
      %v311 = vsel %vm303, 1, 0
      %v312 = vcvt.s32.f32 %v304
      %v313 = vcvt.s32.f32 %v305
      %v314 = vcvt.s32.f32 %v306
      %v315 = vcvt.s32.f32 %v307
      %v316 = vcvt.s32.f32 %v308
      %v317 = vcvt.s32.f32 %v309
      %v318 = vcvt.s32.f32 %v310
      %v319 = vcvt.s32.f32 %v311
      %v320 = vld [vmem:[%s232] sm:$0xff]
      %v321 = vperm.slane %v320, 0
      %v322 = vlaneseq
      %v323 = vshrl.u32 %v322, 7
      %325 = vset.pattern.permute.xlu0 %v323
      %326 = vperm.xlu0 %325, %v321
      %v327 = vpop.permute.xlu0 %326
      %v328 = vperm.slane %v320, 1
      %v329 = vlaneseq
      %v330 = vshrl.u32 %v329, 7
      %332 = vset.pattern.permute.xlu0 %v330
      %333 = vperm.xlu0 %332, %v328
      %v334 = vpop.permute.xlu0 %333
      %v335 = vperm.slane %v320, 2
      %v336 = vlaneseq
      %v337 = vshrl.u32 %v336, 7
      %339 = vset.pattern.permute.xlu0 %v337
      %340 = vperm.xlu0 %339, %v335
      %v341 = vpop.permute.xlu0 %340
      %v342 = vperm.slane %v320, 3
      %v343 = vlaneseq
      %v344 = vshrl.u32 %v343, 7
      %346 = vset.pattern.permute.xlu0 %v344
      %347 = vperm.xlu0 %346, %v342
      %v348 = vpop.permute.xlu0 %347
      %v349 = vperm.slane %v320, 4
      %v350 = vlaneseq
      %v351 = vshrl.u32 %v350, 7
      %353 = vset.pattern.permute.xlu0 %v351
      %354 = vperm.xlu0 %353, %v349
      %v355 = vpop.permute.xlu0 %354
      %v356 = vperm.slane %v320, 5
      %v357 = vlaneseq
      %v358 = vshrl.u32 %v357, 7
      %360 = vset.pattern.permute.xlu0 %v358
      %361 = vperm.xlu0 %360, %v356
      %v362 = vpop.permute.xlu0 %361
      %v363 = vperm.slane %v320, 6
      %v364 = vlaneseq
      %v365 = vshrl.u32 %v364, 7
      %367 = vset.pattern.permute.xlu0 %v365
      %368 = vperm.xlu0 %367, %v363
      %v369 = vpop.permute.xlu0 %368
      %v370 = vperm.slane %v320, 7
      %v371 = vlaneseq
      %v372 = vshrl.u32 %v371, 7
      %374 = vset.pattern.permute.xlu0 %v372
      %375 = vperm.xlu0 %374, %v370
      %v376 = vpop.permute.xlu0 %375
      %vm377 = vcmp.eq.s32.totalorder %v238, %v327
      %vm378 = vcmp.eq.s32.totalorder %v238, %v334
      %vm379 = vcmp.eq.s32.totalorder %v238, %v341
      %vm380 = vcmp.eq.s32.totalorder %v238, %v348
      %vm381 = vcmp.eq.s32.totalorder %v238, %v355
      %vm382 = vcmp.eq.s32.totalorder %v238, %v362
      %vm383 = vcmp.eq.s32.totalorder %v238, %v369
      %vm384 = vcmp.eq.s32.totalorder %v238, %v376
      %v385 = vsel %vm377, 1, 0
      %v386 = vsel %vm378, 1, 0
      %v387 = vsel %vm379, 1, 0
      %v388 = vsel %vm380, 1, 0
      %v389 = vsel %vm381, 1, 0
      %v390 = vsel %vm382, 1, 0
      %v391 = vsel %vm383, 1, 0
      %v392 = vsel %vm384, 1, 0
      %v393 = vcvt.s32.f32 %v385
      %v394 = vcvt.s32.f32 %v386
      %v395 = vcvt.s32.f32 %v387
      %v396 = vcvt.s32.f32 %v388
      %v397 = vcvt.s32.f32 %v389
      %v398 = vcvt.s32.f32 %v390
      %v399 = vcvt.s32.f32 %v391
      %v400 = vcvt.s32.f32 %v392
      %v401 = vld [vmem:[%s2] sm:$0xff]
      %v402 = vld [vmem:[%s2 + $0x8] sm:$0xff]
      %v403 = vld [vmem:[%s2 + $0x10] sm:$0xff]
      %v404 = vld [vmem:[%s2 + $0x18] sm:$0xff]
      %v405 = vld [vmem:[%s2 + $0x20] sm:$0xff]
      %v406 = vld [vmem:[%s2 + $0x28] sm:$0xff]
      %v407 = vld [vmem:[%s2 + $0x30] sm:$0xff]
      %v408 = vld [vmem:[%s2 + $0x38] sm:$0xff]
      %v409 = vld [vmem:[%s2 + $0x40] sm:$0xff]
      %v410 = vld [vmem:[%s2 + $0x48] sm:$0xff]
      %v411 = vld [vmem:[%s2 + $0x50] sm:$0xff]
      %v412 = vld [vmem:[%s2 + $0x58] sm:$0xff]
      %v413 = vld [vmem:[%s2 + $0x60] sm:$0xff]
      %v414 = vld [vmem:[%s2 + $0x68] sm:$0xff]
      %v415 = vld [vmem:[%s2 + $0x70] sm:$0xff]
      %v416 = vld [vmem:[%s2 + $0x78] sm:$0xff]
      %v417 = vld [vmem:[%s3] sm:$0xff]
      %v418 = vld [vmem:[%s3 + $0x8] sm:$0xff]
      %v419 = vld [vmem:[%s3 + $0x10] sm:$0xff]
      %v420 = vld [vmem:[%s3 + $0x18] sm:$0xff]
      %v421 = vld [vmem:[%s3 + $0x20] sm:$0xff]
      %v422 = vld [vmem:[%s3 + $0x28] sm:$0xff]
      %v423 = vld [vmem:[%s3 + $0x30] sm:$0xff]
      %v424 = vld [vmem:[%s3 + $0x38] sm:$0xff]
      %v425 = vld [vmem:[%s3 + $0x40] sm:$0xff]
      %v426 = vld [vmem:[%s3 + $0x48] sm:$0xff]
      %v427 = vld [vmem:[%s3 + $0x50] sm:$0xff]
      %v428 = vld [vmem:[%s3 + $0x58] sm:$0xff]
      %v429 = vld [vmem:[%s3 + $0x60] sm:$0xff]
      %v430 = vld [vmem:[%s3 + $0x68] sm:$0xff]
      %v431 = vld [vmem:[%s3 + $0x70] sm:$0xff]
      %v432 = vld [vmem:[%s3 + $0x78] sm:$0xff]
      %433 = vmatpush.msra.mxu0 %v432
      %434 = vmatpush.msra.mxu0 %v431
      %435 = vmatpush.msra.mxu0 %v430
      %436 = vmatpush.msra.mxu0 %v429
      %437 = vmatpush.msra.mxu0 %v428
      %438 = vmatpush.msra.mxu0 %v427
      %439 = vmatpush.msra.mxu0 %v426
      %440 = vmatpush.msra.mxu0 %v425
      %441 = vmatpush.msra.mxu0 %v424
      %442 = vmatpush.msra.mxu0 %v423
      %443 = vmatpush.msra.mxu0 %v422
      %444 = vmatpush.msra.mxu0 %v421
      %445 = vmatpush.msra.mxu0 %v420
      %446 = vmatpush.msra.mxu0 %v419
      %447 = vmatpush.msra.mxu0 %v418
      %448 = vmatpush.msra.mxu0 %v417
      %449 = vmatmul.f32.gmra.mxu0 %v393
      %v450 = vpop.f32.mrf.mxu0
      %v451 = vadd.f32 0.0, %v450
      %452 = vmatmul.f32.gmra.mxu0 %v394
      %v453 = vpop.f32.mrf.mxu0
      %v454 = vadd.f32 0.0, %v453
      %455 = vmatmul.f32.gmra.mxu0 %v395
      %v456 = vpop.f32.mrf.mxu0
      %v457 = vadd.f32 0.0, %v456
      %458 = vmatmul.f32.gmra.mxu0 %v396
      %v459 = vpop.f32.mrf.mxu0
      %v460 = vadd.f32 0.0, %v459
      %461 = vmatmul.f32.gmra.mxu0 %v397
      %v462 = vpop.f32.mrf.mxu0
      %v463 = vadd.f32 0.0, %v462
      %464 = vmatmul.f32.gmra.mxu0 %v398
      %v465 = vpop.f32.mrf.mxu0
      %v466 = vadd.f32 0.0, %v465
      %467 = vmatmul.f32.gmra.mxu0 %v399
      %v468 = vpop.f32.mrf.mxu0
      %v469 = vadd.f32 0.0, %v468
      %470 = vmatmul.f32.gmra.mxu0 %v400
      %v471 = vpop.f32.mrf.mxu0
      %v472 = vadd.f32 0.0, %v471
      %473 = vdwg.mxu0
      %474 = vmatpush.msra.mxu0 %v416
      %475 = vmatpush.msra.mxu0 %v415
      %476 = vmatpush.msra.mxu0 %v414
      %477 = vmatpush.msra.mxu0 %v413
      %478 = vmatpush.msra.mxu0 %v412
      %479 = vmatpush.msra.mxu0 %v411
      %480 = vmatpush.msra.mxu0 %v410
      %481 = vmatpush.msra.mxu0 %v409
      %482 = vmatpush.msra.mxu0 %v408
      %483 = vmatpush.msra.mxu0 %v407
      %484 = vmatpush.msra.mxu0 %v406
      %485 = vmatpush.msra.mxu0 %v405
      %486 = vmatpush.msra.mxu0 %v404
      %487 = vmatpush.msra.mxu0 %v403
      %488 = vmatpush.msra.mxu0 %v402
      %489 = vmatpush.msra.mxu0 %v401
      %490 = vmatmul.f32.gmra.mxu0 %v312
      %v491 = vpop.f32.mrf.mxu0
      %v492 = vadd.f32 %v451, %v491
      %493 = vmatmul.f32.gmra.mxu0 %v313
      %v494 = vpop.f32.mrf.mxu0
      %v495 = vadd.f32 %v454, %v494
      %496 = vmatmul.f32.gmra.mxu0 %v314
      %v497 = vpop.f32.mrf.mxu0
      %v498 = vadd.f32 %v457, %v497
      %499 = vmatmul.f32.gmra.mxu0 %v315
      %v500 = vpop.f32.mrf.mxu0
      %v501 = vadd.f32 %v460, %v500
      %502 = vmatmul.f32.gmra.mxu0 %v316
      %v503 = vpop.f32.mrf.mxu0
      %v504 = vadd.f32 %v463, %v503
      %505 = vmatmul.f32.gmra.mxu0 %v317
      %v506 = vpop.f32.mrf.mxu0
      %v507 = vadd.f32 %v466, %v506
      %508 = vmatmul.f32.gmra.mxu0 %v318
      %v509 = vpop.f32.mrf.mxu0
      %v510 = vadd.f32 %v469, %v509
      %511 = vmatmul.f32.gmra.mxu0 %v319
      %v512 = vpop.f32.mrf.mxu0
      %v513 = vadd.f32 %v472, %v512
      %514 = vdwg.mxu0
      %v515 = vlaneseq
      %v516 = vshrl.u32 %v515, 7
      %vm517 = vcmp.lt.s32.totalorder %v516, 7
      %v518 = vsel %vm517, 1, 0
      %vm519 = vcmp.eq.s32.totalorder %v518, 1
      %v520 = vsel %vm519, %v492, -inf
      %v521 = vsel %vm519, %v495, -inf
      %v522 = vsel %vm519, %v498, -inf
      %v523 = vsel %vm519, %v501, -inf
      %v524 = vsel %vm519, %v504, -inf
      %v525 = vsel %vm519, %v507, -inf
      %v526 = vsel %vm519, %v510, -inf
      %v527 = vsel %vm519, %v513, -inf
      %v528 = vrot.slane %v520, 4
      %v529 = vmax.f32 %v520, %v528
      %v530 = vrot.slane %v529, 2
      %v531 = vmax.f32 %v529, %v530
      %v532 = vrot.slane %v531, 1
      %v533 = vmax.f32 %v531, %v532
      %v534 = vrot.slane %v521, 4
      %v535 = vmax.f32 %v521, %v534
      %v536 = vrot.slane %v535, 2
      %v537 = vmax.f32 %v535, %v536
      %v538 = vrot.slane %v537, 1
      %v539 = vmax.f32 %v537, %v538
      %v540 = vrot.slane %v522, 4
      %v541 = vmax.f32 %v522, %v540
      %v542 = vrot.slane %v541, 2
      %v543 = vmax.f32 %v541, %v542
      %v544 = vrot.slane %v543, 1
      %v545 = vmax.f32 %v543, %v544
      %v546 = vrot.slane %v523, 4
      %v547 = vmax.f32 %v523, %v546
      %v548 = vrot.slane %v547, 2
      %v549 = vmax.f32 %v547, %v548
      %v550 = vrot.slane %v549, 1
      %v551 = vmax.f32 %v549, %v550
      %v552 = vrot.slane %v524, 4
      %v553 = vmax.f32 %v524, %v552
      %v554 = vrot.slane %v553, 2
      %v555 = vmax.f32 %v553, %v554
      %v556 = vrot.slane %v555, 1
      %v557 = vmax.f32 %v555, %v556
      %v558 = vrot.slane %v525, 4
      %v559 = vmax.f32 %v525, %v558
      %v560 = vrot.slane %v559, 2
      %v561 = vmax.f32 %v559, %v560
      %v562 = vrot.slane %v561, 1
      %v563 = vmax.f32 %v561, %v562
      %v564 = vrot.slane %v526, 4
      %v565 = vmax.f32 %v526, %v564
      %v566 = vrot.slane %v565, 2
      %v567 = vmax.f32 %v565, %v566
      %v568 = vrot.slane %v567, 1
      %v569 = vmax.f32 %v567, %v568
      %v570 = vrot.slane %v527, 4
      %v571 = vmax.f32 %v527, %v570
      %v572 = vrot.slane %v571, 2
      %v573 = vmax.f32 %v571, %v572
      %v574 = vrot.slane %v573, 1
      %v575 = vmax.f32 %v573, %v574
      %v576 = vld [vmem:[%s4] sm:$0x1]
      %v578 = vperm.slane %v576, 0
      %v580 = vadd.f32 %v533, %v578
      %v581 = vadd.f32 %v539, %v578
      %v582 = vadd.f32 %v545, %v578
      %v583 = vadd.f32 %v551, %v578
      %v584 = vadd.f32 %v557, %v578
      %v585 = vadd.f32 %v563, %v578
      %v586 = vadd.f32 %v569, %v578
      %v587 = vadd.f32 %v575, %v578
      %v596 = vrot.slane %v581, 7
      %vm597 = vcmask 1041409
      %v598 = vsel %vm597, %v596, %v580
      %v599 = vrot.slane %v582, 6
      %vm600 = vcmask 1042434
      %v601 = vsel %vm600, %v599, %v598
      %v602 = vrot.slane %v583, 5
      %vm603 = vcmask 1043459
      %v604 = vsel %vm603, %v602, %v601
      %v605 = vrot.slane %v584, 4
      %vm606 = vcmask 1044484
      %v607 = vsel %vm606, %v605, %v604
      %v608 = vrot.slane %v585, 3
      %vm609 = vcmask 1045509
      %v610 = vsel %vm609, %v608, %v607
      %v611 = vrot.slane %v586, 2
      %vm612 = vcmask 1046534
      %v613 = vsel %vm612, %v611, %v610
      %v614 = vrot.slane %v587, 1
      %vm615 = vcmask 1047559
      %v616 = vsel %vm615, %v614, %v613
      %618 = vst [vmem:[%s236] sm:$0xff] %v616
      %p619 = scmp.lt.s32.totalorder %s16, 1
      %s620 = scalar_select %p619, %s16, 1
      %s621 = smul.addr %s620, 8
      %s622 = scalar_lea.vmem %s5, %s621
      // Predicated region
      $region41: #{pinyin_embedding_forward.1} parent=39 // pred_check
        %p623 = pneg %p149
      $region42: #{pinyin_embedding_forward.1} parent=39 // pred_check_branch
        %625 = sbr.rel (%p623) target = $region44
      $region43: #{pinyin_embedding_forward.1} parent=39 // pred_region
        _
      $region44: #{pinyin_embedding_forward.1} parent=39 // pred_fallthru
        _
    $region40: #{pinyin_embedding_forward.1} parent=5 // pred_fallthru
      _
    %p626 = scmp.le.s32.totalorder 2, %s11
    // Predicated region
    $region45: #{pinyin_embedding_forward.1} parent=5 // pred_check
      %p627 = pneg %p626
    $region46: #{pinyin_embedding_forward.1} parent=5 // pred_check_branch
      %629 = sbr.rel (%p627) target = $region48
    $region47: #{pinyin_embedding_forward.1} parent=5 // pred_region
      %s630 = ssub.s32 %s11, 2
      // Predicated region
      $region49: #{pinyin_embedding_forward.1} parent=47 // pred_check
        %p631 = pneg %p155
      $region50: #{pinyin_embedding_forward.1} parent=47 // pred_check_branch
        %633 = sbr.rel (%p631) target = $region52
      $region51: #{pinyin_embedding_forward.1} parent=47 // pred_region
        %p634 = scmp.lt.s32.totalorder %s17, 1
        %s635 = scalar_select %p634, %s17, 1
        %s636 = smul.addr %s635, 8
        %s637 = scalar_lea.vmem %s5, %s636
      $region52: #{pinyin_embedding_forward.1} parent=47 // pred_fallthru
        _
    $region48: #{pinyin_embedding_forward.1} parent=5 // pred_fallthru
      _
  $region6: #{pinyin_embedding_forward.1} parent=0 // loop_footer
    %s15 = sadd.s32 1, %s11
  $region7: #{pinyin_embedding_forward.1} parent=0 // loop_footer_branch
    %10 = sbr.rel target = $region3
  $region8: #{pinyin_embedding_forward.1} parent=0 // loop_exit
    _

</llo_original>
